<compile_context>
chip_gen: v7x
topology: tpu7x:2x2x1
jax: 0.10.0
libtpu: 0.0.40
codegen_flags: <defaults>
</compile_context>

<pallas_src>
import functools

import jax
import jax.numpy as jnp
from jax import lax
from jax.experimental import pallas as pl
from jax.experimental.pallas import tpu as pltpu

EPS = 1e-5


# --------------------------------------------------------------------------- #
# VMEM sizing helpers
# --------------------------------------------------------------------------- #
def _vmem_capacity_bytes():
    """Physical VMEM of the local chip (per TensorCore); conservative default."""
    try:
        return int(pltpu.get_tpu_info().vmem_capacity_bytes)
    except Exception:
        return 64 << 20  # smallest across v5e/v6e/v7x (v7x: 64 MiB per TC)


def _legal_channel_tiles(C):
    # A channel tile must be a multiple of 8 (sublane rule) dividing C, or C itself.
    return [C] + [t for t in range(8, C, 8) if C % t == 0]


def _choose_tile(candidates, max_tc, C, min_tiles):
    legal = [t for t in candidates if t <= max_tc]
    if not legal:
        return None
    # Prefer tiles that give >= min_tiles (even-count) grid steps so both v7x
    # TensorCores stream and pipelining has something to overlap; among those,
    # take the largest tile (fewest grid steps, biggest DMAs).
    pref = [t for t in legal if (C // t) >= min_tiles and (C // t) % 2 == 0]
    if not pref:
        pref = [t for t in legal if (C // t) >= min_tiles]
    pool = pref if pref else legal
    return max(pool)


def _pick_channel_tile_fused(N, C, HW, itemsize, budget_bytes, min_tiles=4):
    """Channel tile for the single-pass kernel: blocks of (N, tc, HW).
    Returns None when no legal tile fits the budget (caller falls back)."""
    f32_tmp = 4 if itemsize < 4 else 0            # f32 upcast temporary
    per_elem = 4 * itemsize + f32_tmp             # 2x in bufs + 2x out bufs (+tmp)
    bytes_per_chan = N * HW * per_elem
    max_tc = budget_bytes // max(bytes_per_chan, 1)
    return _choose_tile(_legal_channel_tiles(C), max_tc, C, min_tiles)


def _pick_channel_tile_per_sample(C, HW, itemsize, budget_bytes, min_tiles=4):
    """Channel tile for the two-pass fallback: blocks of (1, tc, HW)."""
    f32_tmp = 4 if itemsize < 4 else 0
    per_elem = 4 * itemsize + f32_tmp
    bytes_per_chan = HW * per_elem
    max_tc = budget_bytes // max(bytes_per_chan, 1)
    cands = _legal_channel_tiles(C)
    tc = _choose_tile(cands, max_tc, C, min_tiles)
    if tc is None:
        # TODO(synk): truly huge per-sample spatial slabs would also need HW
        # blocking; take the smallest legal channel tile instead of failing.
        tc = min(cands)
    return tc


# --------------------------------------------------------------------------- #
# Single-pass kernel: stats + apply fused per channel tile (whole batch resident)
# --------------------------------------------------------------------------- #
def _sbn_fused_kernel(x_ref, gw_ref, gb_ref, o_ref, *, inv_n):
    # x_ref: (N, TC, HW); gw_ref / gb_ref: (N, TC, 1); o_ref: (N, TC, HW)
    xf = x_ref[...].astype(jnp.float32)
    s1 = jnp.sum(xf, axis=-1, keepdims=True)                 # (N, TC, 1)
    s2 = jnp.sum(xf * xf, axis=-1, keepdims=True)            # (N, TC, 1)
    s1 = jnp.sum(s1, axis=0, keepdims=True)                  # (1, TC, 1)
    s2 = jnp.sum(s2, axis=0, keepdims=True)                  # (1, TC, 1)

    mean = s1 * inv_n
    var = jnp.maximum(s2 * inv_n - mean * mean, 0.0)          # clamp one-pass var
    inv_std = lax.rsqrt(var + EPS)                            # (1, TC, 1)

    gw = gw_ref[...].astype(jnp.float32)                      # gamma * bn_weight
    gb = gb_ref[...].astype(jnp.float32)                      # gamma * bn_bias + beta
    scale = gw * inv_std                                      # (N, TC, 1)
    bias = gb - scale * mean                                  # (N, TC, 1)

    # Re-read x from VMEM (vld slots are far from saturated) instead of keeping
    # the f32 copy live across the stats phase -> smaller peak VMEM footprint.
    o_ref[...] = (x_ref[...].astype(jnp.float32) * scale + bias).astype(o_ref.dtype)


def _run_fused(x3, gw, gb, tc, vmem_limit, inv_n):
    N, C, HW = x3.shape
    kernel = functools.partial(_sbn_fused_kernel, inv_n=inv_n)
    return pl.pallas_call(
        kernel,
        out_shape=jax.ShapeDtypeStruct((N, C, HW), x3.dtype),
        grid=(C // tc,),
        in_specs=[
            pl.BlockSpec((N, tc, HW), lambda c: (0, c, 0)),
            pl.BlockSpec((N, tc, 1), lambda c: (0, c, 0)),
            pl.BlockSpec((N, tc, 1), lambda c: (0, c, 0)),
        ],
        out_specs=pl.BlockSpec((N, tc, HW), lambda c: (0, c, 0)),
        compiler_params=pltpu.CompilerParams(
            dimension_semantics=("parallel",),     # channel tiles are independent
            vmem_limit_bytes=vmem_limit,
        ),
    )(x3, gw, gb)


# --------------------------------------------------------------------------- #
# Two-pass fallback: per-channel stats (batch-reduction grid axis) + apply pass
# --------------------------------------------------------------------------- #
def _sbn_stats_kernel(x_ref, s1_ref, s2_ref):
    # x_ref: (1, TC, HW); s1_ref / s2_ref: (TC, 1) accumulators over the batch axis.
    @pl.when(pl.program_id(1) == 0)
    def _():
        s1_ref[...] = jnp.zeros_like(s1_ref)
        s2_ref[...] = jnp.zeros_like(s2_ref)

    x = x_ref[0].astype(jnp.float32)                          # (TC, HW)
    s1_ref[...] += jnp.sum(x, axis=-1, keepdims=True)
    s2_ref[...] += jnp.sum(x * x, axis=-1, keepdims=True)


def _sbn_apply_kernel(x_ref, scale_ref, bias_ref, o_ref):
    # x_ref: (1, TC, HW); scale_ref / bias_ref: (1, TC, 1)
    o_ref[...] = (x_ref[...].astype(jnp.float32) * scale_ref[...].astype(jnp.float32)
                  + bias_ref[...].astype(jnp.float32)).astype(o_ref.dtype)


def _run_two_pass(x3, gw, gb, tc, vmem_limit, inv_n):
    N, C, HW = x3.shape

    # Pass 1: per-channel sum / sum-of-squares accumulated over the batch axis.
    s1, s2 = pl.pallas_call(
        _sbn_stats_kernel,
        out_shape=(jax.ShapeDtypeStruct((C, 1), jnp.float32),
                   jax.ShapeDtypeStruct((C, 1), jnp.float32)),
        grid=(C // tc, N),
        in_specs=[pl.BlockSpec((1, tc, HW), lambda c, n: (n, c, 0))],
        out_specs=(pl.BlockSpec((tc, 1), lambda c, n: (c, 0)),
                   pl.BlockSpec((tc, 1), lambda c, n: (c, 0))),
        compiler_params=pltpu.CompilerParams(
            dimension_semantics=("parallel", "arbitrary"),
            vmem_limit_bytes=vmem_limit,
        ),
    )(x3)

    # Tiny per-(sample, channel) scale/bias computed in plain JAX.
    mean = s1.reshape(1, C) * inv_n                           # (1, C)
    var = jnp.maximum(s2.reshape(1, C) * inv_n - mean * mean, 0.0)
    inv_std = lax.rsqrt(var + EPS)
    scale2 = gw.reshape(N, C) * inv_std                       # (N, C)
    bias2 = gb.reshape(N, C) - scale2 * mean                  # (N, C)
    scale = scale2.reshape(N, C, 1).astype(jnp.float32)
    bias = bias2.reshape(N, C, 1).astype(jnp.float32)

    # Pass 2: broadcast apply (pure streaming multiply-add).
    return pl.pallas_call(
        _sbn_apply_kernel,
        out_shape=jax.ShapeDtypeStruct((N, C, HW), x3.dtype),
        grid=(C // tc, N),
        in_specs=[
            pl.BlockSpec((1, tc, HW), lambda c, n: (n, c, 0)),
            pl.BlockSpec((1, tc, 1), lambda c, n: (n, c, 0)),
            pl.BlockSpec((1, tc, 1), lambda c, n: (n, c, 0)),
        ],
        out_specs=pl.BlockSpec((1, tc, HW), lambda c, n: (n, c, 0)),
        compiler_params=pltpu.CompilerParams(
            dimension_semantics=("parallel", "parallel"),
            vmem_limit_bytes=vmem_limit,
        ),
    )(x3, scale, bias)


# --------------------------------------------------------------------------- #
# Public wrapper
# --------------------------------------------------------------------------- #
def sandwich_batchnorm2d(x, y, embed_weight, bn_weight, bn_bias, *,
                         vmem_budget_bytes=None):
    """Forward of SandwichBatchNorm2d (training-mode BN statistics).

    x: (N, C, H, W); y: (N,) int class ids.
    embed_weight: (num_classes, 2*C); bn_weight, bn_bias: (C,).
    Returns an (N, C, H, W) array with x's dtype (internal math in f32).
    """
    # TODO(synk): running_mean / running_var tracking (eval-mode BN state) is not
    # implemented; only the training-mode normalized output is computed.
    N, C, H, W = x.shape
    HW = H * W
    x3 = x.reshape(N, C, HW)   # free reshape; spatial axis stays lane-dense, no padding

    # Embedding lookup + pre-folded affines (plain JAX glue on tiny tensors):
    #   out = gamma*((x-mean)*inv_std*w + b) + beta
    #       = x*(gamma*w*inv_std) + (gamma*b + beta) - (gamma*w*inv_std)*mean
    emb = jnp.take(embed_weight, y, axis=0)                   # (N, 2C)
    gamma = emb[:, :C]
    beta = emb[:, C:]
    gw = (gamma * bn_weight[None, :]).reshape(N, C, 1)        # gamma * w
    gb = (gamma * bn_bias[None, :] + beta).reshape(N, C, 1)   # gamma * b + beta

    cap = _vmem_capacity_bytes()
    budget = vmem_budget_bytes if vmem_budget_bytes is not None else (cap * 3) // 8
    vmem_limit = int((cap * 3) // 4)
    inv_n = 1.0 / float(N * HW)

    tc = _pick_channel_tile_fused(N, C, HW, x.dtype.itemsize, budget)
    if tc is not None:
        out3 = _run_fused(x3, gw, gb, tc, vmem_limit, inv_n)
    else:
        # Whole-batch channel slabs don't fit VMEM: two-pass (stats, then apply)
        # gridded per (channel tile, sample). Costs one extra HBM read of x but
        # stays pipelined and fits every TPU generation.
        tc = _pick_channel_tile_per_sample(C, HW, x.dtype.itemsize, budget)
        out3 = _run_two_pass(x3, gw, gb, tc, vmem_limit, inv_n)

    return out3.reshape(N, C, H, W)


# --------------------------------------------------------------------------- #
# Pure-JAX reference + self-test
# --------------------------------------------------------------------------- #
def _reference(x, y, embed_weight, bn_weight, bn_bias):
    mean = jnp.mean(x, axis=(0, 2, 3), keepdims=True)
    var = jnp.var(x, axis=(0, 2, 3), keepdims=True)           # biased (BN train mode)
    x_hat = (x - mean) / jnp.sqrt(var + EPS)
    out = x_hat * bn_weight.reshape(1, -1, 1, 1) + bn_bias.reshape(1, -1, 1, 1)
    emb = jnp.take(embed_weight, y, axis=0)
    C = x.shape[1]
    gamma = emb[:, :C].reshape(-1, C, 1, 1)
    beta = emb[:, C:].reshape(-1, C, 1, 1)
    return gamma * out + beta


def _make_params(key, C, num_classes):
    # Matches the PyTorch module's __init__:
    #   embed.weight[:, :C] ~ Normal(1, 0.02), embed.weight[:, C:] = 0
    #   BatchNorm2d(affine=True): weight = 1, bias = 0
    gamma_part = 1.0 + 0.02 * jax.random.normal(key, (num_classes, C), dtype=jnp.float32)
    beta_part = jnp.zeros((num_classes, C), dtype=jnp.float32)
    embed_weight = jnp.concatenate([gamma_part, beta_part], axis=1)   # (num_classes, 2C)
    bn_weight = jnp.ones((C,), dtype=jnp.float32)
    bn_bias = jnp.zeros((C,), dtype=jnp.float32)
    return embed_weight, bn_weight, bn_bias


if __name__ == "__main__":
    key = jax.random.PRNGKey(0)
    num_classes = 10
    k1, k2, k3, k4, k5, k6 = jax.random.split(key, 6)

    # ---- check 1: fused path, lane-aligned spatial size ----
    N, C, H, W = 2, 4, 16, 16
    x = jax.random.normal(k1, (N, C, H, W), dtype=jnp.float32)
    y = jax.random.randint(k2, (N,), 0, num_classes, dtype=jnp.int32)
    ew, bw, bb = _make_params(k3, C, num_classes)
    out = jax.block_until_ready(sandwich_batchnorm2d(x, y, ew, bw, bb))
    ref = _reference(x, y, ew, bw, bb)
    assert out.shape == (N, C, H, W)
    assert jnp.allclose(out, ref, atol=1e-4, rtol=1e-4), "fused path mismatch"

    # ---- check 2: fused path, misaligned spatial size (HW % 128 != 0, no padding) ----
    N2, C2, H2, W2 = 2, 8, 10, 10
    x2 = jax.random.normal(k4, (N2, C2, H2, W2), dtype=jnp.float32)
    y2 = jax.random.randint(k5, (N2,), 0, num_classes, dtype=jnp.int32)
    ew2, bw2, bb2 = _make_params(k6, C2, num_classes)
    out2 = jax.block_until_ready(sandwich_batchnorm2d(x2, y2, ew2, bw2, bb2))
    ref2 = _reference(x2, y2, ew2, bw2, bb2)
    assert jnp.allclose(out2, ref2, atol=1e-4, rtol=1e-4), "misaligned fused path mismatch"

    # ---- check 3: forced two-pass fallback (tiny VMEM budget) ----
    out3 = jax.block_until_ready(
        sandwich_batchnorm2d(x2, y2, ew2, bw2, bb2, vmem_budget_bytes=1024))
    assert jnp.allclose(out3, ref2, atol=1e-4, rtol=1e-4), "two-pass fallback mismatch"

    print("KERNEL_OK")
</pallas_src>

<mosaic_0001>
module attributes {stable_mosaic.version = 11 : i64} {
  func.func @_sbn_fused_kernel(%arg0: i32, %arg1: memref<2x4x256xf32, #tpu.memory_space<vmem>>, %arg2: memref<2x4x1xf32, #tpu.memory_space<vmem>>, %arg3: memref<2x4x1xf32, #tpu.memory_space<vmem>>, %arg4: memref<2x4x256xf32, #tpu.memory_space<vmem>>) attributes {dimension_semantics = [#tpu.dimension_semantics<parallel>], iteration_bounds = array<i64: 1>, scalar_prefetch = 0 : i64, scratch_operands = 0 : i64, tpu.core_type = #tpu.core_type<tc>, window_params = [{transform_indices = @transform_0, window_bounds = array<i64: 2, 4, 256>}, {transform_indices = @transform_1, window_bounds = array<i64: 2, 4, 1>}, {transform_indices = @transform_2, window_bounds = array<i64: 2, 4, 1>}, {transform_indices = @transform_3, window_bounds = array<i64: 2, 4, 256>}]} {
    %c0 = arith.constant 0 : index
    %c0_0 = arith.constant 0 : index
    %c0_1 = arith.constant 0 : index
    %0 = vector.load %arg1[%c0, %c0_0, %c0_1] : memref<2x4x256xf32, #tpu.memory_space<vmem>>, vector<2x4x256xf32>
    %cst = arith.constant dense<0.000000e+00> : vector<2x4xf32>
    %1 = vector.multi_reduction <add>, %0, %cst [2] : vector<2x4x256xf32> to vector<2x4xf32>
    %2 = vector.shape_cast %1 : vector<2x4xf32> to vector<2x4x1xf32>
    %3 = arith.mulf %0, %0 : vector<2x4x256xf32>
    %cst_2 = arith.constant dense<0.000000e+00> : vector<2x4xf32>
    %4 = vector.multi_reduction <add>, %3, %cst_2 [2] : vector<2x4x256xf32> to vector<2x4xf32>
    %5 = vector.shape_cast %4 : vector<2x4xf32> to vector<2x4x1xf32>
    %cst_3 = arith.constant dense<0.000000e+00> : vector<4x1xf32>
    %6 = vector.multi_reduction <add>, %2, %cst_3 [0] : vector<2x4x1xf32> to vector<4x1xf32>
    %7 = vector.shape_cast %6 : vector<4x1xf32> to vector<1x4x1xf32>
    %cst_4 = arith.constant dense<0.000000e+00> : vector<4x1xf32>
    %8 = vector.multi_reduction <add>, %5, %cst_4 [0] : vector<2x4x1xf32> to vector<4x1xf32>
    %9 = vector.shape_cast %8 : vector<4x1xf32> to vector<1x4x1xf32>
    %cst_5 = arith.constant 0.001953125 : f32
    %10 = vector.broadcast %cst_5 : f32 to vector<1x4x1xf32>
    %11 = arith.mulf %7, %10 : vector<1x4x1xf32>
    %cst_6 = arith.constant 0.001953125 : f32
    %12 = vector.broadcast %cst_6 : f32 to vector<1x4x1xf32>
    %13 = arith.mulf %9, %12 : vector<1x4x1xf32>
    %14 = arith.mulf %11, %11 : vector<1x4x1xf32>
    %15 = arith.subf %13, %14 : vector<1x4x1xf32>
    %cst_7 = arith.constant 0.000000e+00 : f32
    %16 = vector.broadcast %cst_7 : f32 to vector<1x4x1xf32>
    %17 = arith.maximumf %15, %16 : vector<1x4x1xf32>
    %cst_8 = arith.constant 9.99999974E-6 : f32
    %18 = vector.broadcast %cst_8 : f32 to vector<1x4x1xf32>
    %19 = arith.addf %17, %18 : vector<1x4x1xf32>
    %20 = math.rsqrt %19 : vector<1x4x1xf32>
    %c0_9 = arith.constant 0 : index
    %c0_10 = arith.constant 0 : index
    %c0_11 = arith.constant 0 : index
    %21 = vector.load %arg2[%c0_9, %c0_10, %c0_11] : memref<2x4x1xf32, #tpu.memory_space<vmem>>, vector<2x4x1xf32>
    %c0_12 = arith.constant 0 : index
    %c0_13 = arith.constant 0 : index
    %c0_14 = arith.constant 0 : index
    %22 = vector.load %arg3[%c0_12, %c0_13, %c0_14] : memref<2x4x1xf32, #tpu.memory_space<vmem>>, vector<2x4x1xf32>
    %23 = vector.broadcast %20 : vector<1x4x1xf32> to vector<2x4x1xf32>
    %24 = arith.mulf %21, %23 : vector<2x4x1xf32>
    %25 = vector.broadcast %11 : vector<1x4x1xf32> to vector<2x4x1xf32>
    %26 = arith.mulf %24, %25 : vector<2x4x1xf32>
    %27 = arith.subf %22, %26 : vector<2x4x1xf32>
    %c0_15 = arith.constant 0 : index
    %c0_16 = arith.constant 0 : index
    %c0_17 = arith.constant 0 : index
    %28 = vector.load %arg1[%c0_15, %c0_16, %c0_17] : memref<2x4x256xf32, #tpu.memory_space<vmem>>, vector<2x4x256xf32>
    %29 = vector.broadcast %24 : vector<2x4x1xf32> to vector<2x4x256xf32>
    %30 = arith.mulf %28, %29 : vector<2x4x256xf32>
    %31 = vector.broadcast %27 : vector<2x4x1xf32> to vector<2x4x256xf32>
    %32 = arith.addf %30, %31 : vector<2x4x256xf32>
    %c0_18 = arith.constant 0 : index
    %c0_19 = arith.constant 0 : index
    %c0_20 = arith.constant 0 : index
    %33 = vector.load %arg4[%c0_18, %c0_19, %c0_20] : memref<2x4x256xf32, #tpu.memory_space<vmem>>, vector<2x4x256xf32>
    tpu.vector_store %arg4[%c0_18, %c0_19, %c0_20], %32 {strides = array<i32>} : memref<2x4x256xf32, #tpu.memory_space<vmem>>, vector<2x4x256xf32>,
    return
  }
  func.func @transform_0(%arg0: i32) -> (i32, i32, i32) {
    %c0_i32 = arith.constant 0 : i32
    %c0_i32_0 = arith.constant 0 : i32
    %c0_i32_1 = arith.constant 0 : i32
    return %c0_i32, %arg0, %c0_i32_0 : i32, i32, i32
  }
  func.func @transform_1(%arg0: i32) -> (i32, i32, i32) {
    %c0_i32 = arith.constant 0 : i32
    %c0_i32_0 = arith.constant 0 : i32
    %c0_i32_1 = arith.constant 0 : i32
    return %c0_i32, %arg0, %c0_i32_0 : i32, i32, i32
  }
  func.func @transform_2(%arg0: i32) -> (i32, i32, i32) {
    %c0_i32 = arith.constant 0 : i32
    %c0_i32_0 = arith.constant 0 : i32
    %c0_i32_1 = arith.constant 0 : i32
    return %c0_i32, %arg0, %c0_i32_0 : i32, i32, i32
  }
  func.func @transform_3(%arg0: i32) -> (i32, i32, i32) {
    %c0_i32 = arith.constant 0 : i32
    %c0_i32_0 = arith.constant 0 : i32
    %c0_i32_1 = arith.constant 0 : i32
    return %c0_i32, %arg0, %c0_i32_0 : i32, i32, i32
  }
}

</mosaic_0001>

<llo_original>
// kernel: tpu_custom_call.1
$region0: #{tpu_custom_call.1}
  #allocation0 [shape = 'u32[]', space=smem, size = 0x4, offset = 0x4, fixed_abs, tag = 'smem constant byte address 0x4 - core index']
  #allocation1 [shape = 'u32[144,128]{1,0:T(1,128)}', space=vmem, size = 0x12000, scoped, tag = 'internal scratch']
  %s0 = inlined_call_operand.vmem [shape: f32[2,4,256], index: 0, kind: input, shape index: {}]
  %s1 = inlined_call_operand.vmem [shape: f32[2,4,1], index: 1, kind: input, shape index: {}]
  %s2 = inlined_call_operand.vmem [shape: f32[2,4,1], index: 2, kind: input, shape index: {}]
  %s3 = inlined_call_operand.hbm [shape: f32[2,4,256], index: 3, kind: output, shape index: {}]
  %s4 = sld [smem:[#allocation0]]
  $region22: #{tpu_custom_call.1} parent=0
    _
  %s6 = ssub.s32 1, %s4
  %s7 = scalar_select 0, %s6, %s4
  $region1: #{tpu_custom_call.1} parent=0
    #allocation2 [shape = 'u8[8192]{0}', space=vmem, size = 0x2000, scoped, tag = 'output window, operand 0, single buffered']
    #allocation3 [shape = 's32[1]{0}', space=sflag, size = 0x4, scoped, tag = 'scoped memory for tpu_custom_call.1']
    %8 = vsyncpa [#allocation3], 0
    // Predicated region
    $region2: #{tpu_custom_call.1} parent=1 // pred_check
      _
    $region3: #{tpu_custom_call.1} parent=1 // pred_check_branch
      %10 = sbr.rel (0) target = $region5
    $region4: #{tpu_custom_call.1} parent=1 // pred_region
      _
    $region5: #{tpu_custom_call.1} parent=1 // pred_fallthru
      _
    // Predicated region
    $region6: #{tpu_custom_call.1} parent=1 // pred_check
      _
    $region7: #{tpu_custom_call.1} parent=1 // pred_check_branch
      %12 = sbr.rel (0) target = $region9
    $region8: #{tpu_custom_call.1} parent=1 // pred_region
      _
    $region9: #{tpu_custom_call.1} parent=1 // pred_fallthru
      _
    // Predicated region
    $region10: #{tpu_custom_call.1} parent=1 // pred_check
      _
    $region11: #{tpu_custom_call.1} parent=1 // pred_check_branch
      %14 = sbr.rel (0) target = $region13
    $region12: #{tpu_custom_call.1} parent=1 // pred_region
      _
    $region13: #{tpu_custom_call.1} parent=1 // pred_fallthru
      _
    %v15 = vld [vmem:[%s0] sm:$0xff]
    %v16 = vld [vmem:[%s0 + $0x8] sm:$0xff]
    %v19 = vcombine.high %v15, %v15
    %v20 = vcombine.high %v16, %v16
    %vm23 = vcmask 1043456
    %v24 = vsel %vm23, %v15, 0.0
    %v25 = vsel %vm23, %v19, 0.0
    %v26 = vadd.f32 %v24, %v25
    %27 = vadd.xlane.f32.xlu0 %v26
    %v28 = vpop.xlane.xlu0 %27
    %v29 = vsel %vm23, %v16, 0.0
    %v30 = vsel %vm23, %v20, 0.0
    %v31 = vadd.f32 %v29, %v30
    %32 = vadd.xlane.f32.xlu0 %v31
    %v33 = vpop.xlane.xlu0 %32
    %v34 = vmul.f32 %v15, %v15
    %v35 = vmul.f32 %v16, %v16
    %v38 = vcombine.high %v34, %v34
    %v39 = vcombine.high %v35, %v35
    %v42 = vsel %vm23, %v34, 0.0
    %v43 = vsel %vm23, %v38, 0.0
    %v44 = vadd.f32 %v42, %v43
    %45 = vadd.xlane.f32.xlu0 %v44
    %v46 = vpop.xlane.xlu0 %45
    %v47 = vsel %vm23, %v35, 0.0
    %v48 = vsel %vm23, %v39, 0.0
    %v49 = vadd.f32 %v47, %v48
    %50 = vadd.xlane.f32.xlu0 %v49
    %v51 = vpop.xlane.xlu0 %50
    %v52 = vsel %vm23, %v28, 0.0
    %v53 = vsel %vm23, %v33, 0.0
    %v54 = vadd.f32 %v52, %v53
    %v55 = vsel %vm23, %v46, 0.0
    %v56 = vsel %vm23, %v51, 0.0
    %v57 = vadd.f32 %v55, %v56
    %v58 = vmul.f32 %v54, 0.001953125
    %v59 = vmul.f32 %v57, 0.001953125
    %v60 = vmul.f32 %v58, %v58
    %v61 = vsub.f32 %v59, %v60
    %v62 = vmax.f32 %v61, 0.0
    %v63 = vadd.f32 %v62, 1e-05
    %v64 = vrsqrt.pop %v63
    %v65 = vld [vmem:[%s1] sm:$0xf]
    %v66 = vld [vmem:[%s1 + $0x4] sm:$0xf]
    %v67 = vld [vmem:[%s2] sm:$0xf]
    %v68 = vld [vmem:[%s2 + $0x4] sm:$0xf]
    %v69 = vmul.f32 %v65, %v64
    %v70 = vmul.f32 %v66, %v64
    %v71 = vmul.f32 %v69, %v58
    %v72 = vmul.f32 %v70, %v58
    %v73 = vsub.f32 %v67, %v71
    %v74 = vsub.f32 %v68, %v72
    %76 = vset.pattern.permute.xlu0 0
    %77 = vperm.xlu0 %76, %v69
    %v78 = vpop.permute.xlu0 %77
    %80 = vset.pattern.permute.xlu0 0
    %81 = vperm.xlu0 %80, %v70
    %v82 = vpop.permute.xlu0 %81
    %v84 = vunpack.c.l.s4 839922192
    %v85 = vunpack.c.0.s8 %v84
    %v86 = vlaneseq
    %v87 = vshrl.u32 %v86, 7
    %v88 = vsub.s32 %v85, %v87
    %v89 = vrot.slane %v78, %v88
    %v91 = vunpack.c.l.s4 839922192
    %v92 = vunpack.c.0.s8 %v91
    %v93 = vlaneseq
    %v94 = vshrl.u32 %v93, 7
    %v95 = vsub.s32 %v92, %v94
    %v96 = vrot.slane %v82, %v95
    %v99 = vmul.f32 %v15, %v89
    %v100 = vmul.f32 %v16, %v96
    %102 = vset.pattern.permute.xlu0 0
    %103 = vperm.xlu0 %102, %v73
    %v104 = vpop.permute.xlu0 %103
    %106 = vset.pattern.permute.xlu0 0
    %107 = vperm.xlu0 %106, %v74
    %v108 = vpop.permute.xlu0 %107
    %v110 = vunpack.c.l.s4 839922192
    %v111 = vunpack.c.0.s8 %v110
    %v112 = vlaneseq
    %v113 = vshrl.u32 %v112, 7
    %v114 = vsub.s32 %v111, %v113
    %v115 = vrot.slane %v104, %v114
    %v117 = vunpack.c.l.s4 839922192
    %v118 = vunpack.c.0.s8 %v117
    %v119 = vlaneseq
    %v120 = vshrl.u32 %v119, 7
    %v121 = vsub.s32 %v118, %v120
    %v122 = vrot.slane %v108, %v121
    %v125 = vadd.f32 %v99, %v115
    %v126 = vadd.f32 %v100, %v122
    %127 = vst [vmem:[#allocation2] sm:$0xff] %v125
    %128 = vst [vmem:[#allocation2 + $0x8] sm:$0xff] %v126
    // Predicated region
    $region14: #{tpu_custom_call.1} parent=1 // pred_check
      _
    $region15: #{tpu_custom_call.1} parent=1 // pred_check_branch
      %130 = sbr.rel (0) target = $region17
    $region16: #{tpu_custom_call.1} parent=1 // pred_region
      %s132 = ssub.s32 256, 256
      %133 = vsyncadd [#allocation3], %s132
      %s134 = sshll.u32 [#allocation2], 4
      %s135 = int_to_ptr.vmem [resolvable:$true] %s134
      %140 = dma.vmem_to_hbm [thread:$0]  %s135, 256, %s3, [#allocation3], 128, 128, 8
    $region17: #{tpu_custom_call.1} parent=1 // pred_fallthru
      _
    // Predicated region
    $region18: #{tpu_custom_call.1} parent=1 // pred_check
      _
    $region19: #{tpu_custom_call.1} parent=1 // pred_check_branch
      %142 = sbr.rel (0) target = $region21
    $region20: #{tpu_custom_call.1} parent=1 // pred_region
      %143 = dma.done [#allocation3], 256
    $region21: #{tpu_custom_call.1} parent=1 // pred_fallthru
      _
    %144 = vsyncpa [#allocation3], 1

</llo_original>
